<compile_context>
chip_gen: v5e
topology: v5e:2x2
jax: 0.10.0
libtpu: 0.0.40
codegen_flags: <defaults>
</compile_context>

<pallas_src>
import functools
import math

import jax
import jax.numpy as jnp
from jax import lax
from jax.experimental import pallas as pl
from jax.experimental.pallas import tpu as pltpu


# ---------------------------------------------------------------------------
# Kernels
# ---------------------------------------------------------------------------
def _noisy_factored_kernel(x_ref, wmu_ref, wsig_ref, eps_out_ref, eps_in_ref,
                           b_ref, o_ref, acc_ref, *, mxu_dtype):
    """Training path, factorized noise: eps tile built in-kernel."""
    k = pl.program_id(2)

    @pl.when(k == 0)
    def _():
        acc_ref[...] = jnp.zeros_like(acc_ref)

    # (tn, 1) * (1, tk) -> (tn, tk) broadcast outer product on the VPU.
    eps = eps_out_ref[...] * eps_in_ref[...]
    w = wmu_ref[...] + wsig_ref[...] * eps                     # (tn, tk) f32
    x = x_ref[...]                                             # (tm, tk)
    if mxu_dtype is not None:
        w = w.astype(mxu_dtype)
        x = x.astype(mxu_dtype)

    # Contract last axis of both operands -> (tm, tn); no weight transpose.
    acc_ref[...] += lax.dot_general(
        x, w, dimension_numbers=(((1,), (1,)), ((), ())),
        preferred_element_type=jnp.float32)

    @pl.when(k == pl.num_programs(2) - 1)
    def _():
        o_ref[...] = (acc_ref[...] + b_ref[...]).astype(o_ref.dtype)


def _noisy_full_kernel(x_ref, wmu_ref, wsig_ref, weps_ref, b_ref,
                       o_ref, acc_ref, *, mxu_dtype):
    """Training path, full epsilon matrix (independent-noise fallback)."""
    k = pl.program_id(2)

    @pl.when(k == 0)
    def _():
        acc_ref[...] = jnp.zeros_like(acc_ref)

    w = wmu_ref[...] + wsig_ref[...] * weps_ref[...]           # (tn, tk)
    x = x_ref[...]
    if mxu_dtype is not None:
        w = w.astype(mxu_dtype)
        x = x.astype(mxu_dtype)

    acc_ref[...] += lax.dot_general(
        x, w, dimension_numbers=(((1,), (1,)), ((), ())),
        preferred_element_type=jnp.float32)

    @pl.when(k == pl.num_programs(2) - 1)
    def _():
        o_ref[...] = (acc_ref[...] + b_ref[...]).astype(o_ref.dtype)


def _linear_kernel(x_ref, w_ref, b_ref, o_ref, acc_ref, *, mxu_dtype):
    """Eval fast path: x @ weight_mu.T + bias_mu (no sigma/epsilon traffic)."""
    k = pl.program_id(2)

    @pl.when(k == 0)
    def _():
        acc_ref[...] = jnp.zeros_like(acc_ref)

    x = x_ref[...]
    w = w_ref[...]
    if mxu_dtype is not None:
        x = x.astype(mxu_dtype)
        w = w.astype(mxu_dtype)

    acc_ref[...] += lax.dot_general(
        x, w, dimension_numbers=(((1,), (1,)), ((), ())),
        preferred_element_type=jnp.float32)

    @pl.when(k == pl.num_programs(2) - 1)
    def _():
        o_ref[...] = (acc_ref[...] + b_ref[...]).astype(o_ref.dtype)


# ---------------------------------------------------------------------------
# Tiling policy
# ---------------------------------------------------------------------------
_VMEM_BUDGET_BYTES = 40 * 1024 * 1024   # keep <= ~40 MiB double-buffered (v7x safe)
_VMEM_LIMIT_BYTES = 48 * 1024 * 1024


def _round_up(x, m):
    return ((x + m - 1) // m) * m


def _largest_tile(total, unit, cap):
    """Largest multiple of `unit` that divides `total` (a multiple of `unit`)
    and is <= cap."""
    nb = total // unit
    cap_blocks = max(1, cap // unit)
    best = 1
    d = 1
    while d * d <= nb:
        if nb % d == 0:
            for c in (d, nb // d):
                if c <= cap_blocks and c > best:
                    best = c
        d += 1
    return best * unit


def _pick_tiles(Bp, Np, Kp, n_weight_streams, tile_caps=None):
    """Pick (tm, tn, tk) dividing (Bp, Np, Kp) under a VMEM footprint budget."""
    tm_cap, tn_cap, tk_cap = tile_caps if tile_caps is not None else (512, 512, 2048)
    while True:
        tm = _largest_tile(Bp, 8, max(8, tm_cap))
        tn = _largest_tile(Np, 128, max(128, tn_cap))
        tk = _largest_tile(Kp, 128, max(128, tk_cap))
        # Double-buffered inputs/outputs + f32 accumulator, f32 elements.
        footprint = (2 * tm * tk                      # x
                     + n_weight_streams * 2 * tn * tk  # weight streams
                     + 2 * tm * tn                     # output
                     + tm * tn) * 4                    # accumulator
        if footprint <= _VMEM_BUDGET_BYTES:
            break
        if tk_cap > 128:
            tk_cap //= 2
        elif tn_cap > 128:
            tn_cap //= 2
        elif tm_cap > 8:
            tm_cap = max(8, tm_cap // 2)
        else:
            break
    # v7x has 2 TensorCores: if the M grid collapses to one block, split N so
    # both cores get a parallel block (no-op on single-TC v5e/v6e).
    if Bp // tm == 1 and Np // tn == 1 and Np // 128 >= 2:
        tn = _largest_tile(Np, 128, max(128, tn // 2))
    return tm, tn, tk


# ---------------------------------------------------------------------------
# Wrapper
# ---------------------------------------------------------------------------
def noisy_linear(x, weight_mu, weight_sigma, weight_epsilon,
                 bias_mu, bias_sigma, bias_epsilon, *,
                 training=True, mxu_dtype=None,
                 weight_eps_in=None, weight_eps_out=None,
                 tile_caps=None):
    """Pallas TPU implementation of NoisyLinear.forward.

    x: (B, in_features); weight_*: (out_features, in_features); bias_*: (out,).
    If `weight_eps_in` (in,) and `weight_eps_out` (out,) are given and
    weight_epsilon == outer(weight_eps_out, weight_eps_in) (factorized noise,
    as produced by the module's reset_noise), the kernel streams only the two
    vectors instead of the full epsilon matrix.  Returns (B, out) in x.dtype.
    """
    B, in_f = x.shape
    out_f = weight_mu.shape[0]

    # Minimal lane/sublane-friendly padding only.
    Bp = _round_up(B, 8)
    Np = _round_up(out_f, 128)
    Kp = _round_up(in_f, 128)

    factored = training and (weight_eps_in is not None) and (weight_eps_out is not None)
    if not training:
        n_w = 1
    elif factored:
        n_w = 2
    else:
        n_w = 3
    tm, tn, tk = _pick_tiles(Bp, Np, Kp, n_w, tile_caps)
    grid = (Bp // tm, Np // tn, Kp // tk)

    def pad2(a, rows, cols):
        pr, pc = rows - a.shape[0], cols - a.shape[1]
        if pr == 0 and pc == 0:
            return a
        return jnp.pad(a, ((0, pr), (0, pc)))

    def pad_row(v, cols):
        pc = cols - v.shape[0]
        return (v if pc == 0 else jnp.pad(v, (0, pc))).reshape(1, cols)

    def pad_col(v, rows):
        pr = rows - v.shape[0]
        return (v if pr == 0 else jnp.pad(v, (0, pr))).reshape(rows, 1)

    # Combine the bias on the host side: it is only (out,), essentially free,
    # and removes two DMA streams + epilogue VPU ops from the kernel.
    bias = bias_mu + bias_sigma * bias_epsilon if training else bias_mu

    xp = pad2(x, Bp, Kp)
    bp = pad_row(bias, Np)

    x_spec = pl.BlockSpec((tm, tk), lambda i, j, k: (i, k))
    w_spec = pl.BlockSpec((tn, tk), lambda i, j, k: (j, k))
    b_spec = pl.BlockSpec((1, tn), lambda i, j, k: (0, j))      # N-indexed only
    eo_spec = pl.BlockSpec((tn, 1), lambda i, j, k: (j, 0))     # eps_out column
    ei_spec = pl.BlockSpec((1, tk), lambda i, j, k: (0, k))     # eps_in row
    o_spec = pl.BlockSpec((tm, tn), lambda i, j, k: (i, j))
    scratch = [pltpu.VMEM((tm, tn), jnp.float32)]
    cparams = pltpu.CompilerParams(
        dimension_semantics=("parallel", "parallel", "arbitrary"),
        vmem_limit_bytes=_VMEM_LIMIT_BYTES)
    out_shape = jax.ShapeDtypeStruct((Bp, Np), x.dtype)

    if not training:
        # Eval: only weight_mu / bias_mu are streamed.
        yp = pl.pallas_call(
            functools.partial(_linear_kernel, mxu_dtype=mxu_dtype),
            out_shape=out_shape,
            grid=grid,
            in_specs=[x_spec, w_spec, b_spec],
            out_specs=o_spec,
            scratch_shapes=scratch,
            compiler_params=cparams,
        )(xp, pad2(weight_mu, Np, Kp), bp)
    elif factored:
        yp = pl.pallas_call(
            functools.partial(_noisy_factored_kernel, mxu_dtype=mxu_dtype),
            out_shape=out_shape,
            grid=grid,
            in_specs=[x_spec, w_spec, w_spec, eo_spec, ei_spec, b_spec],
            out_specs=o_spec,
            scratch_shapes=scratch,
            compiler_params=cparams,
        )(xp,
          pad2(weight_mu, Np, Kp),
          pad2(weight_sigma, Np, Kp),
          pad_col(weight_eps_out, Np),
          pad_row(weight_eps_in, Kp),
          bp)
    else:
        # Full epsilon matrix (independent-noise variants).
        yp = pl.pallas_call(
            functools.partial(_noisy_full_kernel, mxu_dtype=mxu_dtype),
            out_shape=out_shape,
            grid=grid,
            in_specs=[x_spec, w_spec, w_spec, w_spec, b_spec],
            out_specs=o_spec,
            scratch_shapes=scratch,
            compiler_params=cparams,
        )(xp,
          pad2(weight_mu, Np, Kp),
          pad2(weight_sigma, Np, Kp),
          pad2(weight_epsilon, Np, Kp),
          bp)

    return yp[:B, :out_f]


# ---------------------------------------------------------------------------
# Deterministic parameter / noise construction mirroring NoisyLinear.__init__
# ---------------------------------------------------------------------------
def _scale_noise(key, size):
    v = jax.random.normal(key, (size,), dtype=jnp.float32)
    return jnp.sign(v) * jnp.sqrt(jnp.abs(v))


def make_noisy_linear_params(key, in_features, out_features, std_init=0.4):
    k_wmu, k_bmu, k_eps_in, k_eps_out, k_beps = jax.random.split(key, 5)
    mu_range = 1.0 / math.sqrt(in_features)

    weight_mu = jax.random.uniform(
        k_wmu, (out_features, in_features), jnp.float32, -mu_range, mu_range)
    weight_sigma = jnp.full((out_features, in_features),
                            std_init / math.sqrt(in_features), jnp.float32)
    bias_mu = jax.random.uniform(
        k_bmu, (out_features,), jnp.float32, -mu_range, mu_range)
    bias_sigma = jnp.full((out_features,),
                          std_init / math.sqrt(out_features), jnp.float32)

    eps_in = _scale_noise(k_eps_in, in_features)
    eps_out = _scale_noise(k_eps_out, out_features)
    weight_epsilon = jnp.outer(eps_out, eps_in)               # eps_out.ger(eps_in)
    bias_epsilon = _scale_noise(k_beps, out_features)

    return dict(weight_mu=weight_mu, weight_sigma=weight_sigma,
                weight_epsilon=weight_epsilon, bias_mu=bias_mu,
                bias_sigma=bias_sigma, bias_epsilon=bias_epsilon,
                weight_eps_in=eps_in, weight_eps_out=eps_out)


def _reference(x, p, training):
    if training:
        w = p["weight_mu"] + p["weight_sigma"] * p["weight_epsilon"]
        b = p["bias_mu"] + p["bias_sigma"] * p["bias_epsilon"]
    else:
        w, b = p["weight_mu"], p["bias_mu"]
    return jnp.dot(x, w.T, preferred_element_type=jnp.float32,
                   precision=lax.Precision.HIGHEST) + b


def _check(name, x, p, tile_caps=None):
    common = dict(training=True, tile_caps=tile_caps)

    # Training, factored-noise fast path (streams eps vectors only).
    y_fac = jax.block_until_ready(
        noisy_linear(x, p["weight_mu"], p["weight_sigma"], p["weight_epsilon"],
                     p["bias_mu"], p["bias_sigma"], p["bias_epsilon"],
                     weight_eps_in=p["weight_eps_in"],
                     weight_eps_out=p["weight_eps_out"], **common))
    # Training, full epsilon-matrix fallback.
    y_full = jax.block_until_ready(
        noisy_linear(x, p["weight_mu"], p["weight_sigma"], p["weight_epsilon"],
                     p["bias_mu"], p["bias_sigma"], p["bias_epsilon"], **common))
    y_ref = _reference(x, p, training=True)
    assert y_fac.shape == y_ref.shape, (name, y_fac.shape, y_ref.shape)
    assert jnp.allclose(y_fac, y_ref, atol=1e-4, rtol=1e-4), f"{name}: factored mismatch"
    assert jnp.allclose(y_full, y_ref, atol=1e-4, rtol=1e-4), f"{name}: full mismatch"

    # Eval path.
    y_eval = jax.block_until_ready(
        noisy_linear(x, p["weight_mu"], p["weight_sigma"], p["weight_epsilon"],
                     p["bias_mu"], p["bias_sigma"], p["bias_epsilon"],
                     training=False, tile_caps=tile_caps))
    y_eval_ref = _reference(x, p, training=False)
    assert jnp.allclose(y_eval, y_eval_ref, atol=1e-4, rtol=1e-4), \
        f"{name}: eval mismatch"


if __name__ == "__main__":
    key = jax.random.PRNGKey(0)
    k1, k2, kx1, kx2 = jax.random.split(key, 4)

    # Case 1: tiny layer consistent with the Rainbow module demo (single tile).
    # TODO(synk): for layers this small an XLA-fused combine+matmul beats the
    # Pallas-call overhead; the kernel targets the large layers.
    p1 = make_noisy_linear_params(k1, in_features=32, out_features=64)
    x1 = jax.random.normal(kx1, (8, 32), dtype=jnp.float32)
    _check("tiny", x1, p1)

    # Case 2: small shapes with forced tile caps so M, N and K all split into
    # multiple grid steps (exercises the accumulator, pl.when init/finalize,
    # the N-indexed bias/eps_out streams and the K-indexed eps_in stream).
    p2 = make_noisy_linear_params(k2, in_features=384, out_features=256)
    x2 = jax.random.normal(kx2, (24, 384), dtype=jnp.float32)
    _check("tiled", x2, p2, tile_caps=(16, 128, 128))

    print("KERNEL_OK")
</pallas_src>

<mosaic_0001>
module attributes {stable_mosaic.version = 11 : i64} {
  func.func @_noisy_factored_kernel(%arg0: i32, %arg1: i32, %arg2: i32, %arg3: memref<8x128xf32, #tpu.memory_space<vmem>>, %arg4: memref<128x128xf32, #tpu.memory_space<vmem>>, %arg5: memref<128x128xf32, #tpu.memory_space<vmem>>, %arg6: memref<128x1xf32, #tpu.memory_space<vmem>>, %arg7: memref<1x128xf32, #tpu.memory_space<vmem>>, %arg8: memref<1x128xf32, #tpu.memory_space<vmem>>, %arg9: memref<8x128xf32, #tpu.memory_space<vmem>>, %arg10: memref<8x128xf32, #tpu.memory_space<vmem>>) attributes {dimension_semantics = [#tpu.dimension_semantics<parallel>, #tpu.dimension_semantics<parallel>, #tpu.dimension_semantics<arbitrary>], iteration_bounds = array<i64: 1, 1, 1>, scalar_prefetch = 0 : i64, scratch_operands = 1 : i64, tpu.core_type = #tpu.core_type<tc>, window_params = [{transform_indices = @transform_0, window_bounds = array<i64: 8, 128>}, {transform_indices = @transform_1, window_bounds = array<i64: 128, 128>}, {transform_indices = @transform_2, window_bounds = array<i64: 128, 128>}, {transform_indices = @transform_3, window_bounds = array<i64: 128, 1>}, {transform_indices = @transform_4, window_bounds = array<i64: 1, 128>}, {transform_indices = @transform_5, window_bounds = array<i64: 1, 128>}, {transform_indices = @transform_6, window_bounds = array<i64: 8, 128>}]} {
    %c0_i32 = arith.constant 0 : i32
    %0 = arith.cmpi eq, %arg2, %c0_i32 : i32
    %1 = arith.extui %0 : i1 to i32
    %c0_i32_0 = arith.constant 0 : i32
    %2 = arith.cmpi ne, %1, %c0_i32_0 : i32
    scf.if %2 {
      %cst_16 = arith.constant 0.000000e+00 : f32
      %20 = vector.broadcast %cst_16 : f32 to vector<8x128xf32>
      %c0_17 = arith.constant 0 : index
      %c0_18 = arith.constant 0 : index
      %21 = vector.load %arg10[%c0_17, %c0_18] : memref<8x128xf32, #tpu.memory_space<vmem>>, vector<8x128xf32>
      tpu.vector_store %arg10[%c0_17, %c0_18], %20 {strides = array<i32>} : memref<8x128xf32, #tpu.memory_space<vmem>>, vector<8x128xf32>,
    } else {
    }
    %c0 = arith.constant 0 : index
    %c0_1 = arith.constant 0 : index
    %3 = vector.load %arg6[%c0, %c0_1] : memref<128x1xf32, #tpu.memory_space<vmem>>, vector<128x1xf32>
    %c0_2 = arith.constant 0 : index
    %c0_3 = arith.constant 0 : index
    %4 = vector.load %arg7[%c0_2, %c0_3] : memref<1x128xf32, #tpu.memory_space<vmem>>, vector<1x128xf32>
    %5 = vector.broadcast %3 : vector<128x1xf32> to vector<128x128xf32>
    %6 = vector.broadcast %4 : vector<1x128xf32> to vector<128x128xf32>
    %7 = arith.mulf %5, %6 : vector<128x128xf32>
    %c0_4 = arith.constant 0 : index
    %c0_5 = arith.constant 0 : index
    %8 = vector.load %arg4[%c0_4, %c0_5] : memref<128x128xf32, #tpu.memory_space<vmem>>, vector<128x128xf32>
    %c0_6 = arith.constant 0 : index
    %c0_7 = arith.constant 0 : index
    %9 = vector.load %arg5[%c0_6, %c0_7] : memref<128x128xf32, #tpu.memory_space<vmem>>, vector<128x128xf32>
    %10 = arith.mulf %9, %7 : vector<128x128xf32>
    %11 = arith.addf %8, %10 : vector<128x128xf32>
    %c0_8 = arith.constant 0 : index
    %c0_9 = arith.constant 0 : index
    %12 = vector.load %arg3[%c0_8, %c0_9] : memref<8x128xf32, #tpu.memory_space<vmem>>, vector<8x128xf32>
    %c0_10 = arith.constant 0 : index
    %c0_11 = arith.constant 0 : index
    %13 = vector.load %arg10[%c0_10, %c0_11] : memref<8x128xf32, #tpu.memory_space<vmem>>, vector<8x128xf32>
    %cst = arith.constant dense<0.000000e+00> : vector<8x128xf32>
    %14 = tpu.matmul %12, %11, %cst {dimension_numbers = #tpu.dot_dimension_numbers<[1], [1], [0], [0], [0, 0, 1, 0], [], []>} : vector<8x128xf32>, vector<128x128xf32>, vector<8x128xf32> -> vector<8x128xf32>
    %15 = arith.addf %13, %14 : vector<8x128xf32>
    %c0_12 = arith.constant 0 : index
    %c0_13 = arith.constant 0 : index
    %16 = vector.load %arg10[%c0_12, %c0_13] : memref<8x128xf32, #tpu.memory_space<vmem>>, vector<8x128xf32>
    tpu.vector_store %arg10[%c0_12, %c0_13], %15 {strides = array<i32>} : memref<8x128xf32, #tpu.memory_space<vmem>>, vector<8x128xf32>,
    %c0_i32_14 = arith.constant 0 : i32
    %17 = arith.cmpi eq, %arg2, %c0_i32_14 : i32
    %18 = arith.extui %17 : i1 to i32
    %c0_i32_15 = arith.constant 0 : i32
    %19 = arith.cmpi ne, %18, %c0_i32_15 : i32
    scf.if %19 {
      %c0_16 = arith.constant 0 : index
      %c0_17 = arith.constant 0 : index
      %20 = vector.load %arg10[%c0_16, %c0_17] : memref<8x128xf32, #tpu.memory_space<vmem>>, vector<8x128xf32>
      %c0_18 = arith.constant 0 : index
      %c0_19 = arith.constant 0 : index
      %21 = vector.load %arg8[%c0_18, %c0_19] : memref<1x128xf32, #tpu.memory_space<vmem>>, vector<1x128xf32>
      %22 = vector.broadcast %21 : vector<1x128xf32> to vector<8x128xf32>
      %23 = arith.addf %20, %22 : vector<8x128xf32>
      %c0_20 = arith.constant 0 : index
      %c0_21 = arith.constant 0 : index
      %24 = vector.load %arg9[%c0_20, %c0_21] : memref<8x128xf32, #tpu.memory_space<vmem>>, vector<8x128xf32>
      tpu.vector_store %arg9[%c0_20, %c0_21], %23 {strides = array<i32>} : memref<8x128xf32, #tpu.memory_space<vmem>>, vector<8x128xf32>,
    } else {
    }
    return
  }
  func.func @transform_0(%arg0: i32, %arg1: i32, %arg2: i32) -> (i32, i32) {
    %c0_i32 = arith.constant 0 : i32
    return %arg0, %arg2 : i32, i32
  }
  func.func @transform_1(%arg0: i32, %arg1: i32, %arg2: i32) -> (i32, i32) {
    %c0_i32 = arith.constant 0 : i32
    return %arg1, %arg2 : i32, i32
  }
  func.func @transform_2(%arg0: i32, %arg1: i32, %arg2: i32) -> (i32, i32) {
    %c0_i32 = arith.constant 0 : i32
    return %arg1, %arg2 : i32, i32
  }
  func.func @transform_3(%arg0: i32, %arg1: i32, %arg2: i32) -> (i32, i32) {
    %c0_i32 = arith.constant 0 : i32
    %c0_i32_0 = arith.constant 0 : i32
    return %arg1, %c0_i32 : i32, i32
  }
  func.func @transform_4(%arg0: i32, %arg1: i32, %arg2: i32) -> (i32, i32) {
    %c0_i32 = arith.constant 0 : i32
    %c0_i32_0 = arith.constant 0 : i32
    return %c0_i32, %arg2 : i32, i32
  }
  func.func @transform_5(%arg0: i32, %arg1: i32, %arg2: i32) -> (i32, i32) {
    %c0_i32 = arith.constant 0 : i32
    %c0_i32_0 = arith.constant 0 : i32
    return %c0_i32, %arg1 : i32, i32
  }
  func.func @transform_6(%arg0: i32, %arg1: i32, %arg2: i32) -> (i32, i32) {
    %c0_i32 = arith.constant 0 : i32
    return %arg0, %arg1 : i32, i32
  }
}

</mosaic_0001>

<llo_original>
// kernel: tpu_custom_call.1
$region0: #{tpu_custom_call.1}
  #allocation0 [shape = 'u32[]', space=smem, size = 0x4, offset = 0x4, fixed_abs, tag = 'smem constant byte address 0x4 - core index']
  #allocation1 [shape = 'u32[72,128]{1,0:T(1,128)}', space=vmem, size = 0x9000, scoped, tag = 'internal scratch']
  #allocation2 [shape = 'f32[8,128]{1,0:T(8,128)}', space=vmem, size = 0x1000, scoped, tag = 'scratch operand']
  %s0 = inlined_call_operand.hbm [shape: f32[8,128], index: 0, kind: input, shape index: {}]
  %s1 = inlined_call_operand.vmem [shape: f32[128,128], index: 1, kind: input, shape index: {}]
  %s2 = inlined_call_operand.hbm [shape: f32[128,128], index: 2, kind: input, shape index: {}]
  %s3 = inlined_call_operand.vmem [shape: f32[128,1], index: 3, kind: input, shape index: {}]
  %s4 = inlined_call_operand.vmem [shape: f32[1,128], index: 4, kind: input, shape index: {}]
  %s5 = inlined_call_operand.vmem [shape: f32[1,128], index: 5, kind: input, shape index: {}]
  %s6 = inlined_call_operand.hbm [shape: f32[8,128], index: 6, kind: output, shape index: {}]
  %s7 = sld [smem:[#allocation0]]
  $region50: #{tpu_custom_call.1} parent=0
    _
  %s9 = ssub.s32 1, %s7
  %s10 = scalar_select 0, %s9, %s7
  $region1: #{tpu_custom_call.1} parent=0
    #allocation3 [shape = 'u8[4096]{0}', space=vmem, size = 0x1000, scoped, tag = 'input window, operand 0, single buffered']
    #allocation4 [shape = 's32[1]{0}', space=sflag, size = 0x4, scoped, tag = 'scoped memory for tpu_custom_call.1']
    #allocation5 [shape = 's32[1]{0}', space=sflag, size = 0x4, scoped, tag = 'scoped memory for tpu_custom_call.1']
    #allocation6 [shape = 'u8[65536]{0}', space=vmem, size = 0x10000, scoped, tag = 'input window, operand 2, single buffered']
    #allocation7 [shape = 's32[1]{0}', space=sflag, size = 0x4, scoped, tag = 'scoped memory for tpu_custom_call.1']
    #allocation8 [shape = 'u8[4096]{0}', space=vmem, size = 0x1000, scoped, tag = 'output window, operand 0, single buffered']
    %11 = vsyncpa [#allocation4], 0
    %12 = vsyncpa [#allocation7], 0
    %13 = vsyncpa [#allocation5], 0
    // Predicated region
    $region2: #{tpu_custom_call.1} parent=1 // pred_check
      _
    $region3: #{tpu_custom_call.1} parent=1 // pred_check_branch
      %15 = sbr.rel (0) target = $region5
    $region4: #{tpu_custom_call.1} parent=1 // pred_region
      %17 = vsyncadd [#allocation4], 0
      %s19 = sshll.u32 %s0, 4
      %s20 = int_to_ptr.hbm [resolvable:$true] %s19
      %s21 = sshll.u32 [#allocation3], 4
      %s22 = int_to_ptr.vmem [resolvable:$true] %s21
      %24 = dma.hbm_to_vmem [thread:$0]  %s20, 128, %s22, [#allocation4]
    $region5: #{tpu_custom_call.1} parent=1 // pred_fallthru
      _
    // Predicated region
    $region6: #{tpu_custom_call.1} parent=1 // pred_check
      _
    $region7: #{tpu_custom_call.1} parent=1 // pred_check_branch
      %26 = sbr.rel (0) target = $region9
    $region8: #{tpu_custom_call.1} parent=1 // pred_region
      _
    $region9: #{tpu_custom_call.1} parent=1 // pred_fallthru
      _
    // Predicated region
    $region10: #{tpu_custom_call.1} parent=1 // pred_check
      _
    $region11: #{tpu_custom_call.1} parent=1 // pred_check_branch
      %28 = sbr.rel (0) target = $region13
    $region12: #{tpu_custom_call.1} parent=1 // pred_region
      %30 = vsyncadd [#allocation7], 0
      %s31 = sshll.u32 %s2, 4
      %s32 = int_to_ptr.hbm [resolvable:$true] %s31
      %s33 = sshll.u32 [#allocation6], 4
      %s34 = int_to_ptr.vmem [resolvable:$true] %s33
      %39 = dma.hbm_to_vmem [thread:$0]  %s32, 2048, %s34, [#allocation7], 128, 128, 8
    $region13: #{tpu_custom_call.1} parent=1 // pred_fallthru
      _
    // Predicated region
    $region14: #{tpu_custom_call.1} parent=1 // pred_check
      _
    $region15: #{tpu_custom_call.1} parent=1 // pred_check_branch
      %41 = sbr.rel (0) target = $region17
    $region16: #{tpu_custom_call.1} parent=1 // pred_region
      _
    $region17: #{tpu_custom_call.1} parent=1 // pred_fallthru
      _
    // Predicated region
    $region18: #{tpu_custom_call.1} parent=1 // pred_check
      _
    $region19: #{tpu_custom_call.1} parent=1 // pred_check_branch
      %43 = sbr.rel (0) target = $region21
    $region20: #{tpu_custom_call.1} parent=1 // pred_region
      _
    $region21: #{tpu_custom_call.1} parent=1 // pred_fallthru
      _
    // Predicated region
    $region22: #{tpu_custom_call.1} parent=1 // pred_check
      _
    $region23: #{tpu_custom_call.1} parent=1 // pred_check_branch
      %45 = sbr.rel (0) target = $region25
    $region24: #{tpu_custom_call.1} parent=1 // pred_region
      _
    $region25: #{tpu_custom_call.1} parent=1 // pred_fallthru
      _
    // Predicated region
    $region26: #{tpu_custom_call.1} parent=1 // pred_check
      _
    $region27: #{tpu_custom_call.1} parent=1 // pred_check_branch
      %47 = sbr.rel (0) target = $region29
    $region28: #{tpu_custom_call.1} parent=1 // pred_region
      %49 = dma.done [#allocation4], 128
    $region29: #{tpu_custom_call.1} parent=1 // pred_fallthru
      _
    // Predicated region
    $region30: #{tpu_custom_call.1} parent=1 // pred_check
      _
    $region31: #{tpu_custom_call.1} parent=1 // pred_check_branch
      %51 = sbr.rel (0) target = $region33
    $region32: #{tpu_custom_call.1} parent=1 // pred_region
      %53 = dma.done [#allocation7], 2048
    $region33: #{tpu_custom_call.1} parent=1 // pred_fallthru
      _
    %p54 = scmp.eq.s32.totalorder 0, 0
    // Predicated region
    $region34: #{tpu_custom_call.1} parent=1 // pred_check
      %p55 = pneg %p54
    $region35: #{tpu_custom_call.1} parent=1 // pred_check_branch
      %57 = sbr.rel (%p55) target = $region37
    $region36: #{tpu_custom_call.1} parent=1 // pred_region
      %58 = vst [vmem:[#allocation2] sm:$0xff] 0.0
    $region37: #{tpu_custom_call.1} parent=1 // pred_fallthru
      _
    %v59 = vld [vmem:[%s3] sm:$0xff]
    %v60 = vld [vmem:[%s3 + $0x8] sm:$0xff]
    %v61 = vld [vmem:[%s3 + $0x10] sm:$0xff]
    %v62 = vld [vmem:[%s3 + $0x18] sm:$0xff]
    %v63 = vld [vmem:[%s3 + $0x20] sm:$0xff]
    %v64 = vld [vmem:[%s3 + $0x28] sm:$0xff]
    %v65 = vld [vmem:[%s3 + $0x30] sm:$0xff]
    %v66 = vld [vmem:[%s3 + $0x38] sm:$0xff]
    %v67 = vld [vmem:[%s3 + $0x40] sm:$0xff]
    %v68 = vld [vmem:[%s3 + $0x48] sm:$0xff]
    %v69 = vld [vmem:[%s3 + $0x50] sm:$0xff]
    %v70 = vld [vmem:[%s3 + $0x58] sm:$0xff]
    %v71 = vld [vmem:[%s3 + $0x60] sm:$0xff]
    %v72 = vld [vmem:[%s3 + $0x68] sm:$0xff]
    %v73 = vld [vmem:[%s3 + $0x70] sm:$0xff]
    %v74 = vld [vmem:[%s3 + $0x78] sm:$0xff]
    %v75 = vld [vmem:[%s4] sm:$0x1]
    %77 = vset.pattern.permute.xlu0 0
    %78 = vperm.xlu0 %77, %v59
    %v79 = vpop.permute.xlu0 %78
    %82 = vset.pattern.permute.xlu0 0
    %83 = vperm.xlu0 %82, %v60
    %v84 = vpop.permute.xlu0 %83
    %87 = vset.pattern.permute.xlu0 0
    %88 = vperm.xlu0 %87, %v61
    %v89 = vpop.permute.xlu0 %88
    %92 = vset.pattern.permute.xlu0 0
    %93 = vperm.xlu0 %92, %v62
    %v94 = vpop.permute.xlu0 %93
    %97 = vset.pattern.permute.xlu0 0
    %98 = vperm.xlu0 %97, %v63
    %v99 = vpop.permute.xlu0 %98
    %102 = vset.pattern.permute.xlu0 0
    %103 = vperm.xlu0 %102, %v64
    %v104 = vpop.permute.xlu0 %103
    %107 = vset.pattern.permute.xlu0 0
    %108 = vperm.xlu0 %107, %v65
    %v109 = vpop.permute.xlu0 %108
    %112 = vset.pattern.permute.xlu0 0
    %113 = vperm.xlu0 %112, %v66
    %v114 = vpop.permute.xlu0 %113
    %117 = vset.pattern.permute.xlu0 0
    %118 = vperm.xlu0 %117, %v67
    %v119 = vpop.permute.xlu0 %118
    %122 = vset.pattern.permute.xlu0 0
    %123 = vperm.xlu0 %122, %v68
    %v124 = vpop.permute.xlu0 %123
    %127 = vset.pattern.permute.xlu0 0
    %128 = vperm.xlu0 %127, %v69
    %v129 = vpop.permute.xlu0 %128
    %132 = vset.pattern.permute.xlu0 0
    %133 = vperm.xlu0 %132, %v70
    %v134 = vpop.permute.xlu0 %133
    %137 = vset.pattern.permute.xlu0 0
    %138 = vperm.xlu0 %137, %v71
    %v139 = vpop.permute.xlu0 %138
    %142 = vset.pattern.permute.xlu0 0
    %143 = vperm.xlu0 %142, %v72
    %v144 = vpop.permute.xlu0 %143
    %147 = vset.pattern.permute.xlu0 0
    %148 = vperm.xlu0 %147, %v73
    %v149 = vpop.permute.xlu0 %148
    %152 = vset.pattern.permute.xlu0 0
    %153 = vperm.xlu0 %152, %v74
    %v154 = vpop.permute.xlu0 %153
    %v157 = vperm.slane %v75, 0
    %v159 = vmul.f32 %v79, %v157
    %v160 = vmul.f32 %v84, %v157
    %v161 = vmul.f32 %v89, %v157
    %v162 = vmul.f32 %v94, %v157
    %v163 = vmul.f32 %v99, %v157
    %v164 = vmul.f32 %v104, %v157
    %v165 = vmul.f32 %v109, %v157
    %v166 = vmul.f32 %v114, %v157
    %v167 = vmul.f32 %v119, %v157
    %v168 = vmul.f32 %v124, %v157
    %v169 = vmul.f32 %v129, %v157
    %v170 = vmul.f32 %v134, %v157
    %v171 = vmul.f32 %v139, %v157
    %v172 = vmul.f32 %v144, %v157
    %v173 = vmul.f32 %v149, %v157
    %v174 = vmul.f32 %v154, %v157
    %v175 = vld [vmem:[%s1] sm:$0xff]
    %v176 = vld [vmem:[%s1 + $0x8] sm:$0xff]
    %v177 = vld [vmem:[%s1 + $0x10] sm:$0xff]
    %v178 = vld [vmem:[%s1 + $0x18] sm:$0xff]
    %v179 = vld [vmem:[%s1 + $0x20] sm:$0xff]
    %v180 = vld [vmem:[%s1 + $0x28] sm:$0xff]
    %v181 = vld [vmem:[%s1 + $0x30] sm:$0xff]
    %v182 = vld [vmem:[%s1 + $0x38] sm:$0xff]
    %v183 = vld [vmem:[%s1 + $0x40] sm:$0xff]
    %v184 = vld [vmem:[%s1 + $0x48] sm:$0xff]
    %v185 = vld [vmem:[%s1 + $0x50] sm:$0xff]
    %v186 = vld [vmem:[%s1 + $0x58] sm:$0xff]
    %v187 = vld [vmem:[%s1 + $0x60] sm:$0xff]
    %v188 = vld [vmem:[%s1 + $0x68] sm:$0xff]
    %v189 = vld [vmem:[%s1 + $0x70] sm:$0xff]
    %v190 = vld [vmem:[%s1 + $0x78] sm:$0xff]
    %v191 = vld [vmem:[#allocation6] sm:$0xff]
    %v192 = vld [vmem:[#allocation6 + $0x8] sm:$0xff]
    %v193 = vld [vmem:[#allocation6 + $0x10] sm:$0xff]
    %v194 = vld [vmem:[#allocation6 + $0x18] sm:$0xff]
    %v195 = vld [vmem:[#allocation6 + $0x20] sm:$0xff]
    %v196 = vld [vmem:[#allocation6 + $0x28] sm:$0xff]
    %v197 = vld [vmem:[#allocation6 + $0x30] sm:$0xff]
    %v198 = vld [vmem:[#allocation6 + $0x38] sm:$0xff]
    %v199 = vld [vmem:[#allocation6 + $0x40] sm:$0xff]
    %v200 = vld [vmem:[#allocation6 + $0x48] sm:$0xff]
    %v201 = vld [vmem:[#allocation6 + $0x50] sm:$0xff]
    %v202 = vld [vmem:[#allocation6 + $0x58] sm:$0xff]
    %v203 = vld [vmem:[#allocation6 + $0x60] sm:$0xff]
    %v204 = vld [vmem:[#allocation6 + $0x68] sm:$0xff]
    %v205 = vld [vmem:[#allocation6 + $0x70] sm:$0xff]
    %v206 = vld [vmem:[#allocation6 + $0x78] sm:$0xff]
    %v207 = vmul.f32 %v191, %v159
    %v208 = vmul.f32 %v192, %v160
    %v209 = vmul.f32 %v193, %v161
    %v210 = vmul.f32 %v194, %v162
    %v211 = vmul.f32 %v195, %v163
    %v212 = vmul.f32 %v196, %v164
    %v213 = vmul.f32 %v197, %v165
    %v214 = vmul.f32 %v198, %v166
    %v215 = vmul.f32 %v199, %v167
    %v216 = vmul.f32 %v200, %v168
    %v217 = vmul.f32 %v201, %v169
    %v218 = vmul.f32 %v202, %v170
    %v219 = vmul.f32 %v203, %v171
    %v220 = vmul.f32 %v204, %v172
    %v221 = vmul.f32 %v205, %v173
    %v222 = vmul.f32 %v206, %v174
    %v223 = vadd.f32 %v175, %v207
    %v224 = vadd.f32 %v176, %v208
    %v225 = vadd.f32 %v177, %v209
    %v226 = vadd.f32 %v178, %v210
    %v227 = vadd.f32 %v179, %v211
    %v228 = vadd.f32 %v180, %v212
    %v229 = vadd.f32 %v181, %v213
    %v230 = vadd.f32 %v182, %v214
    %v231 = vadd.f32 %v183, %v215
    %v232 = vadd.f32 %v184, %v216
    %v233 = vadd.f32 %v185, %v217
    %v234 = vadd.f32 %v186, %v218
    %v235 = vadd.f32 %v187, %v219
    %v236 = vadd.f32 %v188, %v220
    %v237 = vadd.f32 %v189, %v221
    %v238 = vadd.f32 %v190, %v222
    %v239 = vld [vmem:[#allocation3] sm:$0xff]
    %v240 = vld [vmem:[#allocation2] sm:$0xff]
    %241 = vmatpush.xpose.msra.mxu0 %v238
    %242 = vmatpush.xpose.msra.mxu0 %v237
    %243 = vmatpush.xpose.msra.mxu0 %v236
    %244 = vmatpush.xpose.msra.mxu0 %v235
    %245 = vmatpush.xpose.msra.mxu0 %v234
    %246 = vmatpush.xpose.msra.mxu0 %v233
    %247 = vmatpush.xpose.msra.mxu0 %v232
    %248 = vmatpush.xpose.msra.mxu0 %v231
    %249 = vmatpush.xpose.msra.mxu0 %v230
    %250 = vmatpush.xpose.msra.mxu0 %v229
    %251 = vmatpush.xpose.msra.mxu0 %v228
    %252 = vmatpush.xpose.msra.mxu0 %v227
    %253 = vmatpush.xpose.msra.mxu0 %v226
    %254 = vmatpush.xpose.msra.mxu0 %v225
    %255 = vmatpush.xpose.msra.mxu0 %v224
    %256 = vmatpush.xpose.msra.mxu0 %v223
    %257 = vmatmul.f32.gmra.mxu0 %v239
    %v258 = vpop.f32.mrf.mxu0
    %v259 = vadd.f32 0.0, %v258
    %260 = vdwg.mxu0
    %v261 = vadd.f32 %v240, %v259
    %262 = vst [vmem:[#allocation2] sm:$0xff] %v261
    // Predicated region
    $region38: #{tpu_custom_call.1} parent=1 // pred_check
      %p263 = pneg %p54
    $region39: #{tpu_custom_call.1} parent=1 // pred_check_branch
      %265 = sbr.rel (%p263) target = $region41
    $region40: #{tpu_custom_call.1} parent=1 // pred_region
      %v266 = vld [vmem:[#allocation2] sm:$0xff]
      %v267 = vld [vmem:[%s5] sm:$0x1]
      %v269 = vperm.slane %v267, 0
      %v271 = vadd.f32 %v266, %v269
      %272 = vst [vmem:[#allocation8] sm:$0xff] %v271
    $region41: #{tpu_custom_call.1} parent=1 // pred_fallthru
      _
    // Predicated region
    $region42: #{tpu_custom_call.1} parent=1 // pred_check
      _
    $region43: #{tpu_custom_call.1} parent=1 // pred_check_branch
      %274 = sbr.rel (0) target = $region45
    $region44: #{tpu_custom_call.1} parent=1 // pred_region
      %276 = vsyncadd [#allocation5], 0
      %s278 = sshll.u32 [#allocation8], 4
      %s279 = int_to_ptr.vmem [resolvable:$true] %s278
      %s280 = sshll.u32 %s6, 4
      %s281 = int_to_ptr.hbm [resolvable:$true] %s280
      %283 = dma.vmem_to_hbm [thread:$0]  %s279, 128, %s281, [#allocation5]
    $region45: #{tpu_custom_call.1} parent=1 // pred_fallthru
      _
    // Predicated region
    $region46: #{tpu_custom_call.1} parent=1 // pred_check
      _
    $region47: #{tpu_custom_call.1} parent=1 // pred_check_branch
      %285 = sbr.rel (0) target = $region49
    $region48: #{tpu_custom_call.1} parent=1 // pred_region
      %287 = dma.done [#allocation5], 128
    $region49: #{tpu_custom_call.1} parent=1 // pred_fallthru
      _
    %288 = vsyncpa [#allocation4], 1
    %289 = vsyncpa [#allocation7], 1
    %290 = vsyncpa [#allocation5], 1

</llo_original>
